<compile_context>
chip_gen: v7x
topology: tpu7x:2x2x1
jax: 0.10.0
libtpu: 0.0.40
codegen_flags: <defaults>
</compile_context>

<pallas_src>
import numpy as np
import jax
import jax.numpy as jnp
from jax.experimental import pallas as pl
from jax.experimental.pallas import tpu as pltpu


# --------------------------- Pallas kernel ---------------------------------
def c_cnn_kernel(x_ref, w1_ref, b1_ref, w2_ref, b2_ref, wd_ref, bd_ref, o_ref):
    f32 = jnp.float32
    bf16 = jnp.bfloat16

    x = x_ref[...]                                             # (bm, L) bf16

    # conv1 + bias + ReLU (pair-split output columns), then MaxPool1d(2) as an
    # elementwise max of the two lane halves (vreg-aligned on v6e/v7x layout).
    y1 = jnp.dot(x, w1_ref[...], preferred_element_type=f32) + b1_ref[...]
    y1 = jnp.maximum(y1, 0.0)
    h1 = y1.shape[1] // 2
    y1p = jnp.maximum(y1[:, :h1], y1[:, h1:]).astype(bf16)     # (bm, hw1)

    # conv2 + bias + ReLU (pair-split), then MaxPool1d(2).
    y2 = jnp.dot(y1p, w2_ref[...], preferred_element_type=f32) + b2_ref[...]
    y2 = jnp.maximum(y2, 0.0)
    h2 = y2.shape[1] // 2
    y2p = jnp.maximum(y2[:, :h2], y2[:, h2:]).astype(bf16)     # (bm, hw2) == torch flatten order

    # 2-class softmax only needs the logit difference d = z1 - z0.
    d = jnp.dot(y2p, wd_ref[...], preferred_element_type=f32) + bd_ref[...]   # (bm, 1)
    d = jnp.clip(d, -30.0, 30.0)                               # avoid exp overflow -> inf
    p0 = pl.reciprocal(1.0 + jnp.exp(d), approx=True)          # softmax_0 = sigmoid(-d), divide on EUP
    o_ref[...] = jnp.concatenate([p0, 1.0 - p0], axis=1)       # single merged store


# --------------------------- host-side glue --------------------------------
def _round_up(n, m):
    return ((n + m - 1) // m) * m


def _mxu_is_256_wide():
    """v6e / v7x have a 2x256^2 MXU: pad pooled halves to 128-lane blocks there.
    Everything else (v5e and older, 128-wide MXU) keeps unpadded halves."""
    try:
        kind = jax.devices()[0].device_kind.lower()
    except Exception:
        return False
    return ("v6" in kind) or ("v7" in kind)


def _expanded_conv_mats(w, b, L, in_width, out_half_width):
    """Fold Conv1d(k=3, stride=1, pad=1) into one matmul with pair-split output
    columns so MaxPool1d(2) becomes max(first half, second half) of the lanes.

    w: (Co, Ci, 3), b: (Co,).  Input lane index is ci*L + l (channel-major),
    zero-padded up to `in_width`.  Output column j = h*out_half_width + co*Lp + m
    holds the conv output at (co, 2m+h); columns >= Co*Lp inside each half are
    zero weight / zero bias (so they stay zero after ReLU + max).  All constants
    are tiny, batch-independent, and built traceably (gather + mask) so the
    whole wrapper can be jitted.
    """
    Co, Ci, K = w.shape
    Lp = L // 2
    assert in_width >= Ci * L and out_half_width >= Co * Lp
    R, N = in_width, 2 * out_half_width
    co_i = np.zeros((R, N), np.int32)
    ci_i = np.zeros((R, N), np.int32)
    k_i = np.zeros((R, N), np.int32)
    msk = np.zeros((R, N), np.float32)
    bcol = np.zeros((N,), np.int32)
    bmsk = np.zeros((1, N), np.float32)
    for h in range(2):
        for co in range(Co):
            for m in range(Lp):
                j = h * out_half_width + co * Lp + m
                bcol[j] = co
                bmsk[0, j] = 1.0
                l_out = 2 * m + h
                for k in range(K):
                    l_in = l_out + k - 1
                    if 0 <= l_in < L:
                        for ci in range(Ci):
                            r = ci * L + l_in
                            co_i[r, j], ci_i[r, j], k_i[r, j] = co, ci, k
                            msk[r, j] = 1.0
    w_exp = (jnp.asarray(msk) * w[co_i, ci_i, k_i]).astype(jnp.float32)
    b_exp = (jnp.asarray(bmsk) * b[bcol].reshape(1, N)).astype(jnp.float32)
    return w_exp, b_exp


def init_params(input_dim, key):
    C1, C2 = 16, 32
    L2 = (input_dim // 2) // 2
    flat = C2 * L2                      # 32 if input_dim == 5, 64 if input_dim == 8
    ks = jax.random.split(key, 6)
    return dict(
        w1=0.2 * jax.random.normal(ks[0], (C1, 1, 3), jnp.float32),   # torch conv1 weight
        b1=0.1 * jax.random.normal(ks[1], (C1,), jnp.float32),
        w2=0.2 * jax.random.normal(ks[2], (C2, C1, 3), jnp.float32),  # torch conv2 weight
        b2=0.1 * jax.random.normal(ks[3], (C2,), jnp.float32),
        wl=0.2 * jax.random.normal(ks[4], (2, flat), jnp.float32),    # torch Linear weight
        bl=0.1 * jax.random.normal(ks[5], (2,), jnp.float32),
    )


def c_cnn_forward(x, params, block_rows=2048, align_pool_halves=None):
    B, cin, L = x.shape
    assert cin == 1
    C1, C2 = params["w1"].shape[0], params["w2"].shape[0]
    L1 = L // 2
    L2 = L1 // 2
    flat = C2 * L2

    if align_pool_halves is None:
        align_pool_halves = _mxu_is_256_wide()
    hw1 = _round_up(C1 * L1, 128) if align_pool_halves else C1 * L1
    hw2 = _round_up(C2 * L2, 128) if align_pool_halves else C2 * L2

    # Fold conv taps + MaxPool pair-selection + NCL flatten into small constants.
    W1, B1 = _expanded_conv_mats(params["w1"], params["b1"], L, L, hw1)     # (L,   2*hw1)
    W2, B2 = _expanded_conv_mats(params["w2"], params["b2"], L1, hw1, hw2)  # (hw1, 2*hw2)

    # Only the logit difference is needed for a 2-class softmax.
    wl = params["wl"].astype(jnp.float32)                                   # (2, flat)
    wd = jnp.zeros((hw2, 1), jnp.float32).at[:flat, 0].set(wl[1] - wl[0])
    bd = (params["bl"][1] - params["bl"][0]).reshape(1, 1).astype(jnp.float32)

    # bf16 matmul operands (native MXU dtype, half the input HBM traffic);
    # biases stay f32 and are added to the f32 accumulators.
    W1 = W1.astype(jnp.bfloat16)
    W2 = W2.astype(jnp.bfloat16)
    wd = wd.astype(jnp.bfloat16)
    x2d = x[:, 0, :].astype(jnp.bfloat16)                                   # (B, L)

    # Batch tiled over a parallel grid axis; ragged last block (no padded copy).
    bm = max(8, min(_round_up(block_rows, 8), _round_up(B, 8)))
    grid = (pl.cdiv(B, bm),)

    out = pl.pallas_call(
        c_cnn_kernel,
        out_shape=jax.ShapeDtypeStruct((B, 2), jnp.float32),
        grid=grid,
        in_specs=[
            pl.BlockSpec((bm, L), lambda i: (i, 0)),
            pl.BlockSpec(W1.shape, lambda i: (0, 0)),
            pl.BlockSpec(B1.shape, lambda i: (0, 0)),
            pl.BlockSpec(W2.shape, lambda i: (0, 0)),
            pl.BlockSpec(B2.shape, lambda i: (0, 0)),
            pl.BlockSpec(wd.shape, lambda i: (0, 0)),
            pl.BlockSpec(bd.shape, lambda i: (0, 0)),
        ],
        out_specs=pl.BlockSpec((bm, 2), lambda i: (i, 0)),
        compiler_params=pltpu.CompilerParams(
            dimension_semantics=("parallel",),
            vmem_limit_bytes=32 * 1024 * 1024,
        ),
    )(x2d, W1, B1, W2, B2, wd, bd)
    return out


# --------------------------- pure-JAX reference -----------------------------
def c_cnn_reference(x, params):
    B, _, _ = x.shape

    def conv_relu_pool(h, w, b):
        Bc, _, Lc = h.shape
        hp = jnp.pad(h, ((0, 0), (0, 0), (1, 1)))
        out = sum(jnp.einsum("bil,oi->bol", hp[:, :, k:k + Lc], w[:, :, k]) for k in range(3))
        out = jax.nn.relu(out + b.reshape(1, -1, 1))
        Lp = Lc // 2
        return out[:, :, :2 * Lp].reshape(Bc, out.shape[1], Lp, 2).max(-1)

    h = conv_relu_pool(x, params["w1"], params["b1"])
    h = conv_relu_pool(h, params["w2"], params["b2"])
    flat = h.reshape(B, -1)
    logits = flat @ params["wl"].T + params["bl"].reshape(1, 2)
    return jax.nn.softmax(logits, axis=1)


if __name__ == "__main__":
    key = jax.random.PRNGKey(0)
    kx, kp = jax.random.split(key)
    B, input_dim = 2, 8                 # input_dim != 5 -> output layer is Linear(64, 2)
    x = jax.random.normal(kx, (B, 1, input_dim), jnp.float32)
    params = init_params(input_dim, kp)

    fwd = jax.jit(c_cnn_forward)        # host-side constant builders fold under jit
    out = jax.block_until_ready(fwd(x, params))
    ref = c_cnn_reference(x, params)

    assert out.shape == (B, 2)
    assert bool(jnp.all(jnp.isfinite(out)))
    assert jnp.allclose(jnp.sum(out, axis=1), 1.0, atol=1e-5)
    # bf16 matmul operands -> compare against the f32 reference at bf16-level tolerance.
    assert jnp.allclose(out, ref, atol=2e-2, rtol=2e-2), (out, ref)
    print("KERNEL_OK")
</pallas_src>

<mosaic_0001>
module attributes {stable_mosaic.version = 11 : i64} {
  func.func @c_cnn_kernel(%arg0: i32, %arg1: memref<8x8xbf16, #tpu.memory_space<vmem>>, %arg2: memref<8x128xbf16, #tpu.memory_space<vmem>>, %arg3: memref<1x128xf32, #tpu.memory_space<vmem>>, %arg4: memref<64x128xbf16, #tpu.memory_space<vmem>>, %arg5: memref<1x128xf32, #tpu.memory_space<vmem>>, %arg6: memref<64x1xbf16, #tpu.memory_space<vmem>>, %arg7: memref<1x1xf32, #tpu.memory_space<vmem>>, %arg8: memref<8x2xf32, #tpu.memory_space<vmem>>) attributes {dimension_semantics = [#tpu.dimension_semantics<parallel>], iteration_bounds = array<i64: 1>, scalar_prefetch = 0 : i64, scratch_operands = 0 : i64, tpu.core_type = #tpu.core_type<tc>, window_params = [{transform_indices = @transform_0, window_bounds = array<i64: 8, 8>}, {pipeline_mode = #tpu.pipeline_mode<synchronous>, transform_indices = @transform_1, window_bounds = array<i64: 8, 128>}, {pipeline_mode = #tpu.pipeline_mode<synchronous>, transform_indices = @transform_2, window_bounds = array<i64: 1, 128>}, {pipeline_mode = #tpu.pipeline_mode<synchronous>, transform_indices = @transform_3, window_bounds = array<i64: 64, 128>}, {pipeline_mode = #tpu.pipeline_mode<synchronous>, transform_indices = @transform_4, window_bounds = array<i64: 1, 128>}, {pipeline_mode = #tpu.pipeline_mode<synchronous>, transform_indices = @transform_5, window_bounds = array<i64: 64, 1>}, {pipeline_mode = #tpu.pipeline_mode<synchronous>, transform_indices = @transform_6, window_bounds = array<i64: 1, 1>}, {transform_indices = @transform_7, window_bounds = array<i64: 8, 2>}]} {
    %c0 = arith.constant 0 : index
    %c0_0 = arith.constant 0 : index
    %0 = vector.load %arg1[%c0, %c0_0] : memref<8x8xbf16, #tpu.memory_space<vmem>>, vector<8x8xbf16>
    %c0_1 = arith.constant 0 : index
    %c0_2 = arith.constant 0 : index
    %1 = vector.load %arg2[%c0_1, %c0_2] : memref<8x128xbf16, #tpu.memory_space<vmem>>, vector<8x128xbf16>
    %cst = arith.constant dense<0.000000e+00> : vector<8x128xf32>
    %2 = tpu.matmul %0, %1, %cst {dimension_numbers = #tpu.dot_dimension_numbers<[1], [0], [0], [1], [0, 0, 1, 1], [], []>} : vector<8x8xbf16>, vector<8x128xbf16>, vector<8x128xf32> -> vector<8x128xf32>
    %c0_3 = arith.constant 0 : index
    %c0_4 = arith.constant 0 : index
    %3 = vector.load %arg3[%c0_3, %c0_4] : memref<1x128xf32, #tpu.memory_space<vmem>>, vector<1x128xf32>
    %4 = vector.broadcast %3 : vector<1x128xf32> to vector<8x128xf32>
    %5 = arith.addf %2, %4 : vector<8x128xf32>
    %cst_5 = arith.constant 0.000000e+00 : f32
    %6 = vector.broadcast %cst_5 : f32 to vector<8x128xf32>
    %7 = arith.maximumf %5, %6 : vector<8x128xf32>
    %8 = vector.extract_strided_slice %7 {offsets = [0, 0], sizes = [8, 64], strides = [1, 1]} : vector<8x128xf32> to vector<8x64xf32>
    %9 = vector.extract_strided_slice %7 {offsets = [0, 64], sizes = [8, 64], strides = [1, 1]} : vector<8x128xf32> to vector<8x64xf32>
    %10 = arith.maximumf %8, %9 : vector<8x64xf32>
    %11 = arith.truncf %10 : vector<8x64xf32> to vector<8x64xbf16>
    %c0_6 = arith.constant 0 : index
    %c0_7 = arith.constant 0 : index
    %12 = vector.load %arg4[%c0_6, %c0_7] : memref<64x128xbf16, #tpu.memory_space<vmem>>, vector<64x128xbf16>
    %cst_8 = arith.constant dense<0.000000e+00> : vector<8x128xf32>
    %13 = tpu.matmul %11, %12, %cst_8 {dimension_numbers = #tpu.dot_dimension_numbers<[1], [0], [0], [1], [0, 0, 1, 1], [], []>} : vector<8x64xbf16>, vector<64x128xbf16>, vector<8x128xf32> -> vector<8x128xf32>
    %c0_9 = arith.constant 0 : index
    %c0_10 = arith.constant 0 : index
    %14 = vector.load %arg5[%c0_9, %c0_10] : memref<1x128xf32, #tpu.memory_space<vmem>>, vector<1x128xf32>
    %15 = vector.broadcast %14 : vector<1x128xf32> to vector<8x128xf32>
    %16 = arith.addf %13, %15 : vector<8x128xf32>
    %cst_11 = arith.constant 0.000000e+00 : f32
    %17 = vector.broadcast %cst_11 : f32 to vector<8x128xf32>
    %18 = arith.maximumf %16, %17 : vector<8x128xf32>
    %19 = vector.extract_strided_slice %18 {offsets = [0, 0], sizes = [8, 64], strides = [1, 1]} : vector<8x128xf32> to vector<8x64xf32>
    %20 = vector.extract_strided_slice %18 {offsets = [0, 64], sizes = [8, 64], strides = [1, 1]} : vector<8x128xf32> to vector<8x64xf32>
    %21 = arith.maximumf %19, %20 : vector<8x64xf32>
    %22 = arith.truncf %21 : vector<8x64xf32> to vector<8x64xbf16>
    %c0_12 = arith.constant 0 : index
    %c0_13 = arith.constant 0 : index
    %23 = vector.load %arg6[%c0_12, %c0_13] : memref<64x1xbf16, #tpu.memory_space<vmem>>, vector<64x1xbf16>
    %cst_14 = arith.constant dense<0.000000e+00> : vector<8x1xf32>
    %24 = tpu.matmul %22, %23, %cst_14 {dimension_numbers = #tpu.dot_dimension_numbers<[1], [0], [0], [1], [0, 0, 1, 1], [], []>} : vector<8x64xbf16>, vector<64x1xbf16>, vector<8x1xf32> -> vector<8x1xf32>
    %c0_15 = arith.constant 0 : index
    %c0_16 = arith.constant 0 : index
    %25 = vector.load %arg7[%c0_15, %c0_16] : memref<1x1xf32, #tpu.memory_space<vmem>>, vector<1x1xf32>
    %26 = vector.broadcast %25 : vector<1x1xf32> to vector<8x1xf32>
    %27 = arith.addf %24, %26 : vector<8x1xf32>
    %cst_17 = arith.constant -3.000000e+01 : f32
    %cst_18 = arith.constant 3.000000e+01 : f32
    %28 = vector.broadcast %cst_17 : f32 to vector<8x1xf32>
    %29 = arith.maximumf %28, %27 : vector<8x1xf32>
    %30 = vector.broadcast %cst_18 : f32 to vector<8x1xf32>
    %31 = arith.minimumf %30, %29 : vector<8x1xf32>
    %32 = math.exp %31 : vector<8x1xf32>
    %cst_19 = arith.constant 1.000000e+00 : f32
    %33 = vector.broadcast %cst_19 : f32 to vector<8x1xf32>
    %34 = arith.addf %33, %32 : vector<8x1xf32>
    %35 = tpu.reciprocal %34 {approx = true} : vector<8x1xf32> -> vector<8x1xf32>
    %cst_20 = arith.constant 1.000000e+00 : f32
    %36 = vector.broadcast %cst_20 : f32 to vector<8x1xf32>
    %37 = arith.subf %36, %35 : vector<8x1xf32>
    %38 = tpu.concatenate %35, %37 in 1 : vector<8x1xf32>, vector<8x1xf32> -> vector<8x2xf32>
    %c0_21 = arith.constant 0 : index
    %c0_22 = arith.constant 0 : index
    %39 = vector.load %arg8[%c0_21, %c0_22] : memref<8x2xf32, #tpu.memory_space<vmem>>, vector<8x2xf32>
    tpu.vector_store %arg8[%c0_21, %c0_22], %38 {strides = array<i32>} : memref<8x2xf32, #tpu.memory_space<vmem>>, vector<8x2xf32>,
    return
  }
  func.func @transform_0(%arg0: i32) -> (i32, i32) {
    %c0_i32 = arith.constant 0 : i32
    %c0_i32_0 = arith.constant 0 : i32
    return %arg0, %c0_i32 : i32, i32
  }
  func.func @transform_1(%arg0: i32) -> (i32, i32) {
    %c0_i32 = arith.constant 0 : i32
    %c0_i32_0 = arith.constant 0 : i32
    %c0_i32_1 = arith.constant 0 : i32
    return %c0_i32, %c0_i32_0 : i32, i32
  }
  func.func @transform_2(%arg0: i32) -> (i32, i32) {
    %c0_i32 = arith.constant 0 : i32
    %c0_i32_0 = arith.constant 0 : i32
    %c0_i32_1 = arith.constant 0 : i32
    return %c0_i32, %c0_i32_0 : i32, i32
  }
  func.func @transform_3(%arg0: i32) -> (i32, i32) {
    %c0_i32 = arith.constant 0 : i32
    %c0_i32_0 = arith.constant 0 : i32
    %c0_i32_1 = arith.constant 0 : i32
    return %c0_i32, %c0_i32_0 : i32, i32
  }
  func.func @transform_4(%arg0: i32) -> (i32, i32) {
    %c0_i32 = arith.constant 0 : i32
    %c0_i32_0 = arith.constant 0 : i32
    %c0_i32_1 = arith.constant 0 : i32
    return %c0_i32, %c0_i32_0 : i32, i32
  }
  func.func @transform_5(%arg0: i32) -> (i32, i32) {
    %c0_i32 = arith.constant 0 : i32
    %c0_i32_0 = arith.constant 0 : i32
    %c0_i32_1 = arith.constant 0 : i32
    return %c0_i32, %c0_i32_0 : i32, i32
  }
  func.func @transform_6(%arg0: i32) -> (i32, i32) {
    %c0_i32 = arith.constant 0 : i32
    %c0_i32_0 = arith.constant 0 : i32
    %c0_i32_1 = arith.constant 0 : i32
    return %c0_i32, %c0_i32_0 : i32, i32
  }
  func.func @transform_7(%arg0: i32) -> (i32, i32) {
    %c0_i32 = arith.constant 0 : i32
    %c0_i32_0 = arith.constant 0 : i32
    return %arg0, %c0_i32 : i32, i32
  }
}

</mosaic_0001>

<llo_original>
// kernel: c_cnn_forward.1
$region0: #{c_cnn_forward.1}
  #allocation0 [shape = 'u32[]', space=smem, size = 0x4, offset = 0x4, fixed_abs, tag = 'smem constant byte address 0x4 - core index']
  #allocation1 [shape = 'u32[144,128]{1,0:T(1,128)}', space=vmem, size = 0x12000, scoped, tag = 'internal scratch']
  #allocation2 [shape = 'f32[1,1]{1,0:T(1,128)S(1)}', space=vmem, size = 0x200, scoped, tag = 'scoped memory for c_cnn_forward.1']
  %s0 = inlined_call_operand.vmem [shape: bf16[2,8], index: 0, kind: input, shape index: {}]
  %s1 = inlined_call_operand.vmem [shape: bf16[8,128], index: 1, kind: input, shape index: {}]
  %s2 = inlined_call_operand.vmem [shape: f32[1,128], index: 2, kind: input, shape index: {}]
  %s3 = inlined_call_operand.vmem [shape: bf16[64,128], index: 3, kind: input, shape index: {}]
  %s4 = inlined_call_operand.vmem [shape: f32[1,128], index: 4, kind: input, shape index: {}]
  %s5 = inlined_call_operand.vmem [shape: bf16[64,1], index: 5, kind: input, shape index: {}]
  %s6 = inlined_call_operand.<no memory space> [shape: f32[1,1], index: 6, kind: input, shape index: {}]
  %s7 = inlined_call_operand.hbm [shape: f32[2,2], index: 7, kind: output, shape index: {}]
  %s8 = sld [smem:[#allocation0]]
  $region38: #{c_cnn_forward.1} parent=0
    _
  %s10 = ssub.s32 1, %s8
  %s11 = scalar_select 0, %s10, %s8
  %v12 = vstv %s6
  %13 = vst [vmem:[#allocation2] sm:$0x1] %v12
  $region1: #{c_cnn_forward.1} parent=0
    #allocation3 [shape = 'u8[4096]{0}', space=vmem, size = 0x1000, scoped, tag = 'output window, operand 0, single buffered']
    #allocation4 [shape = 's32[1]{0}', space=sflag, size = 0x4, scoped, tag = 'scoped memory for c_cnn_forward.1']
    %14 = vsyncpa [#allocation4], 0
    // Predicated region
    $region2: #{c_cnn_forward.1} parent=1 // pred_check
      _
    $region3: #{c_cnn_forward.1} parent=1 // pred_check_branch
      %16 = sbr.rel (0) target = $region5
    $region4: #{c_cnn_forward.1} parent=1 // pred_region
      _
    $region5: #{c_cnn_forward.1} parent=1 // pred_fallthru
      _
    // Predicated region
    $region6: #{c_cnn_forward.1} parent=1 // pred_check
      _
    $region7: #{c_cnn_forward.1} parent=1 // pred_check_branch
      %18 = sbr.rel (0) target = $region9
    $region8: #{c_cnn_forward.1} parent=1 // pred_region
      _
    $region9: #{c_cnn_forward.1} parent=1 // pred_fallthru
      _
    // Predicated region
    $region10: #{c_cnn_forward.1} parent=1 // pred_check
      _
    $region11: #{c_cnn_forward.1} parent=1 // pred_check_branch
      %20 = sbr.rel (0) target = $region13
    $region12: #{c_cnn_forward.1} parent=1 // pred_region
      _
    $region13: #{c_cnn_forward.1} parent=1 // pred_fallthru
      _
    // Predicated region
    $region14: #{c_cnn_forward.1} parent=1 // pred_check
      _
    $region15: #{c_cnn_forward.1} parent=1 // pred_check_branch
      %22 = sbr.rel (0) target = $region17
    $region16: #{c_cnn_forward.1} parent=1 // pred_region
      _
    $region17: #{c_cnn_forward.1} parent=1 // pred_fallthru
      _
    // Predicated region
    $region18: #{c_cnn_forward.1} parent=1 // pred_check
      _
    $region19: #{c_cnn_forward.1} parent=1 // pred_check_branch
      %24 = sbr.rel (0) target = $region21
    $region20: #{c_cnn_forward.1} parent=1 // pred_region
      _
    $region21: #{c_cnn_forward.1} parent=1 // pred_fallthru
      _
    // Predicated region
    $region22: #{c_cnn_forward.1} parent=1 // pred_check
      _
    $region23: #{c_cnn_forward.1} parent=1 // pred_check_branch
      %26 = sbr.rel (0) target = $region25
    $region24: #{c_cnn_forward.1} parent=1 // pred_region
      _
    $region25: #{c_cnn_forward.1} parent=1 // pred_fallthru
      _
    // Predicated region
    $region26: #{c_cnn_forward.1} parent=1 // pred_check
      _
    $region27: #{c_cnn_forward.1} parent=1 // pred_check_branch
      %28 = sbr.rel (0) target = $region29
    $region28: #{c_cnn_forward.1} parent=1 // pred_region
      _
    $region29: #{c_cnn_forward.1} parent=1 // pred_fallthru
      _
    %v30 = vld [vmem:[%s0] sm:$0x1]
    %v31 = vld [vmem:[%s0 + $0x1] sm:$0x1]
    %v32 = vld [vmem:[%s0 + $0x2] sm:$0x1]
    %v33 = vld [vmem:[%s0 + $0x3] sm:$0x1]
    %v34 = vld [vmem:[%s1] sm:$0xf]
    %v35 = vld [vmem:[%s2] sm:$0x1]
    %v37 = vlaneseq
    %v38 = vshrl.u32 %v37, 7
    %v39 = vsub.s32 0, %v38
    %v40 = vrot.slane %v35, %v39
    %v46 = vcombine.low %v30, %v31
    %v47 = vcombine.low %v32, %v33
    %v49 = vunpack.c.l.s4 1966171168
    %v50 = vunpack.c.0.s8 %v49
    %v51 = vlaneseq
    %v52 = vshrl.u32 %v51, 7
    %v53 = vsub.s32 %v50, %v52
    %v54 = vrot.slane %v46, %v53
    %v56 = vunpack.c.l.s4 1966171168
    %v57 = vunpack.c.0.s8 %v56
    %v58 = vlaneseq
    %v59 = vshrl.u32 %v58, 7
    %v60 = vsub.s32 %v57, %v59
    %v61 = vrot.slane %v47, %v60
    %v62 = vcombine.low %v54, %v61
    %v64 = vunpack.c.l.s4 1966171168
    %v65 = vunpack.c.0.s8 %v64
    %v66 = vlaneseq
    %v67 = vshrl.u32 %v66, 7
    %v68 = vsub.s32 %v65, %v67
    %v69 = vrot.slane %v62, %v68
    %vm70 = vcmask 64512
    %v72 = vsel %vm70, %v69, 0
    %vm74 = vcmask 1043456
    %v76 = vsel %vm74, %v34, 0
    %78 = vmatprep.subr.bf16.mxu0 0
    %79 = vmatpush1.bf16.msra.mxu0 %v76
    %80 = vmatprep.subr.bf16.mxu0 0
    %81 = vmatpush1.bf16.msra.mxu0 0
    %82 = vmatprep.subr.bf16.mxu0 0
    %83 = vmatpush1.bf16.msra.mxu0 0
    %84 = vmatprep.subr.bf16.mxu0 0
    %85 = vmatpush1.bf16.msra.mxu0 0
    %86 = vmatprep.subr.bf16.mxu0 0
    %87 = vmatpush1.bf16.msra.mxu0 0
    %88 = vmatprep.subr.bf16.mxu0 0
    %89 = vmatpush1.bf16.msra.mxu0 0
    %90 = vmatprep.subr.bf16.mxu0 0
    %91 = vmatpush1.bf16.msra.mxu0 0
    %92 = vmatprep.subr.bf16.mxu0 0
    %93 = vmatpush1.bf16.msra.mxu0 0
    %94 = vmatprep.subr.bf16.mxu0 0
    %95 = vmatpush1.bf16.msra.mxu0 0
    %96 = vmatprep.subr.bf16.mxu0 0
    %97 = vmatpush1.bf16.msra.mxu0 0
    %98 = vmatprep.subr.bf16.mxu0 0
    %99 = vmatpush1.bf16.msra.mxu0 0
    %100 = vmatprep.subr.bf16.mxu0 0
    %101 = vmatpush1.bf16.msra.mxu0 0
    %102 = vmatprep.subr.bf16.mxu0 0
    %103 = vmatpush1.bf16.msra.mxu0 0
    %104 = vmatprep.subr.bf16.mxu0 0
    %105 = vmatpush1.bf16.msra.mxu0 0
    %106 = vmatprep.subr.bf16.mxu0 0
    %107 = vmatpush1.bf16.msra.mxu0 0
    %108 = vmatprep.subr.bf16.mxu0 0
    %109 = vmatpush1.bf16.msra.mxu0 0
    %110 = vmatprep.mubr.bf16.mxu0 0
    %111 = vmatmul.mubr.bf16.gmra.mrb[0].mxu0 %v72
    %v112 = vpop.f32.mrb[0].mxu0
    %v113 = vadd.f32 %v40, %v112
    %v114 = vpop.f32.mrb[0].mxu0
    %v115 = vpop.f32.mrb[0].mxu0
    %v116 = vpop.f32.mrb[0].mxu0
    %117 = vdwg.mxu0
    %v118 = vmax.f32 %v113, 0.0
    %120 = vrot.lane.b32.xlu0 %v118, 64
    %v121 = vpop.permute.xlu0 %120
    %v123 = vmax.f32 %v118, %v121
    %v124 = vpack.c.bf16 %v123, %v123
    %v125 = vld [vmem:[%s3] sm:$0xf]
    %v126 = vld [vmem:[%s3 + $0x4] sm:$0xf]
    %v127 = vld [vmem:[%s3 + $0x8] sm:$0xf]
    %v128 = vld [vmem:[%s3 + $0xc] sm:$0xf]
    %v129 = vld [vmem:[%s3 + $0x10] sm:$0xf]
    %v130 = vld [vmem:[%s3 + $0x14] sm:$0xf]
    %v131 = vld [vmem:[%s3 + $0x18] sm:$0xf]
    %v132 = vld [vmem:[%s3 + $0x1c] sm:$0xf]
    %v133 = vld [vmem:[%s4] sm:$0x1]
    %v135 = vlaneseq
    %v136 = vshrl.u32 %v135, 7
    %v137 = vsub.s32 0, %v136
    %v138 = vrot.slane %v133, %v137
    %v148 = vunpack.c.l.b16 %v125
    %v149 = vunpack.c.l.b16 %v126
    %v150 = vunpack.c.l.b16 %v127
    %v151 = vunpack.c.l.b16 %v128
    %v152 = vunpack.c.l.b16 %v129
    %v153 = vunpack.c.l.b16 %v130
    %v154 = vunpack.c.l.b16 %v131
    %v155 = vunpack.c.l.b16 %v132
    %v156 = vpack.c.b16 %v149, %v148
    %v157 = vpack.c.b16 %v151, %v150
    %v158 = vpack.c.b16 %v153, %v152
    %v159 = vpack.c.b16 %v155, %v154
    %vm164 = vcmask 523264
    %v166 = vsel %vm164, %v124, 0
    %168 = vmatprep.subr.bf16.mxu0 0
    %169 = vmatpush1.bf16.msra.mxu0 %v156
    %170 = vmatprep.subr.bf16.mxu0 0
    %171 = vmatpush1.bf16.msra.mxu0 %v157
    %172 = vmatprep.subr.bf16.mxu0 0
    %173 = vmatpush1.bf16.msra.mxu0 %v158
    %174 = vmatprep.subr.bf16.mxu0 0
    %175 = vmatpush1.bf16.msra.mxu0 %v159
    %176 = vmatprep.subr.bf16.mxu0 0
    %177 = vmatpush1.bf16.msra.mxu0 0
    %178 = vmatprep.subr.bf16.mxu0 0
    %179 = vmatpush1.bf16.msra.mxu0 0
    %180 = vmatprep.subr.bf16.mxu0 0
    %181 = vmatpush1.bf16.msra.mxu0 0
    %182 = vmatprep.subr.bf16.mxu0 0
    %183 = vmatpush1.bf16.msra.mxu0 0
    %184 = vmatprep.subr.bf16.mxu0 0
    %185 = vmatpush1.bf16.msra.mxu0 0
    %186 = vmatprep.subr.bf16.mxu0 0
    %187 = vmatpush1.bf16.msra.mxu0 0
    %188 = vmatprep.subr.bf16.mxu0 0
    %189 = vmatpush1.bf16.msra.mxu0 0
    %190 = vmatprep.subr.bf16.mxu0 0
    %191 = vmatpush1.bf16.msra.mxu0 0
    %192 = vmatprep.subr.bf16.mxu0 0
    %193 = vmatpush1.bf16.msra.mxu0 0
    %194 = vmatprep.subr.bf16.mxu0 0
    %195 = vmatpush1.bf16.msra.mxu0 0
    %196 = vmatprep.subr.bf16.mxu0 0
    %197 = vmatpush1.bf16.msra.mxu0 0
    %198 = vmatprep.subr.bf16.mxu0 0
    %199 = vmatpush1.bf16.msra.mxu0 0
    %200 = vmatprep.mubr.bf16.mxu0 0
    %201 = vmatmul.mubr.bf16.gmra.mrb[0].mxu0 %v166
    %v202 = vpop.f32.mrb[0].mxu0
    %v203 = vadd.f32 %v138, %v202
    %v204 = vpop.f32.mrb[0].mxu0
    %v205 = vpop.f32.mrb[0].mxu0
    %v206 = vpop.f32.mrb[0].mxu0
    %207 = vdwg.mxu0
    %v208 = vmax.f32 %v203, 0.0
    %210 = vrot.lane.b32.xlu0 %v208, 64
    %v211 = vpop.permute.xlu0 %210
    %v213 = vmax.f32 %v208, %v211
    %v214 = vpack.c.bf16 %v213, %v213
    %v215 = vld [vmem:[%s5] sm:$0xf]
    %v216 = vld [vmem:[%s5 + $0x4] sm:$0xf]
    %v217 = vld [vmem:[%s5 + $0x8] sm:$0xf]
    %v218 = vld [vmem:[%s5 + $0xc] sm:$0xf]
    %v219 = vld [vmem:[%s5 + $0x10] sm:$0xf]
    %v220 = vld [vmem:[%s5 + $0x14] sm:$0xf]
    %v221 = vld [vmem:[%s5 + $0x18] sm:$0xf]
    %v222 = vld [vmem:[%s5 + $0x1c] sm:$0xf]
    %v223 = vld [vmem:[#allocation2] sm:$0x1]
    %v225 = vlaneseq
    %v226 = vshrl.u32 %v225, 7
    %v227 = vsub.s32 0, %v226
    %v228 = vrot.slane %v223, %v227
    %v238 = vunpack.c.l.b16 %v215
    %v239 = vunpack.c.l.b16 %v216
    %v240 = vunpack.c.l.b16 %v217
    %v241 = vunpack.c.l.b16 %v218
    %v242 = vunpack.c.l.b16 %v219
    %v243 = vunpack.c.l.b16 %v220
    %v244 = vunpack.c.l.b16 %v221
    %v245 = vunpack.c.l.b16 %v222
    %v246 = vpack.c.b16 %v239, %v238
    %v247 = vpack.c.b16 %v241, %v240
    %v248 = vpack.c.b16 %v243, %v242
    %v249 = vpack.c.b16 %v245, %v244
    %v255 = vsel %vm164, %v214, 0
    %257 = vmatprep.subr.bf16.mxu0 0
    %258 = vmatpush1.bf16.msra.mxu0 %v246
    %259 = vmatprep.subr.bf16.mxu0 0
    %260 = vmatpush1.bf16.msra.mxu0 %v247
    %261 = vmatprep.subr.bf16.mxu0 0
    %262 = vmatpush1.bf16.msra.mxu0 %v248
    %263 = vmatprep.subr.bf16.mxu0 0
    %264 = vmatpush1.bf16.msra.mxu0 %v249
    %265 = vmatprep.subr.bf16.mxu0 0
    %266 = vmatpush1.bf16.msra.mxu0 0
    %267 = vmatprep.subr.bf16.mxu0 0
    %268 = vmatpush1.bf16.msra.mxu0 0
    %269 = vmatprep.subr.bf16.mxu0 0
    %270 = vmatpush1.bf16.msra.mxu0 0
    %271 = vmatprep.subr.bf16.mxu0 0
    %272 = vmatpush1.bf16.msra.mxu0 0
    %273 = vmatprep.subr.bf16.mxu0 0
    %274 = vmatpush1.bf16.msra.mxu0 0
    %275 = vmatprep.subr.bf16.mxu0 0
    %276 = vmatpush1.bf16.msra.mxu0 0
    %277 = vmatprep.subr.bf16.mxu0 0
    %278 = vmatpush1.bf16.msra.mxu0 0
    %279 = vmatprep.subr.bf16.mxu0 0
    %280 = vmatpush1.bf16.msra.mxu0 0
    %281 = vmatprep.subr.bf16.mxu0 0
    %282 = vmatpush1.bf16.msra.mxu0 0
    %283 = vmatprep.subr.bf16.mxu0 0
    %284 = vmatpush1.bf16.msra.mxu0 0
    %285 = vmatprep.subr.bf16.mxu0 0
    %286 = vmatpush1.bf16.msra.mxu0 0
    %287 = vmatprep.subr.bf16.mxu0 0
    %288 = vmatpush1.bf16.msra.mxu0 0
    %289 = vmatprep.mubr.bf16.mxu0 0
    %290 = vmatmul.mubr.bf16.gmra.mrb[0].mxu0 %v255
    %v291 = vpop.f32.mrb[0].mxu0
    %v292 = vadd.f32 %v228, %v291
    %v293 = vpop.f32.mrb[0].mxu0
    %v294 = vpop.f32.mrb[0].mxu0
    %v295 = vpop.f32.mrb[0].mxu0
    %296 = vdwg.mxu0
    %v297 = vmax.f32 %v292, -30.0
    %v298 = vmin.f32 %v297, 30.0
    %v299 = vmul.f32 %v298, 1.442695
    %v300 = vpow.pop %v299
    %v301 = vadd.f32 %v300, 1.0
    %v302 = vrcp.pop %v301
    %v303 = vsub.f32 1.0, %v302
    %305 = vrot.lane.b32.xlu0 %v303, 1
    %v306 = vpop.permute.xlu0 %305
    %vm308 = vcmask 7168
    %v309 = vsel %vm308, %v302, %v306
    %vm310 = vcmask 15360
    %311 = vst.msk [vmem:[#allocation3] sm:$0xff] %vm310, %v309
    // Predicated region
    $region30: #{c_cnn_forward.1} parent=1 // pred_check
      _
    $region31: #{c_cnn_forward.1} parent=1 // pred_check_branch
      %313 = sbr.rel (0) target = $region33
    $region32: #{c_cnn_forward.1} parent=1 // pred_region
      %s315 = ssub.s32 128, 32
      %316 = vsyncadd [#allocation4], %s315
      %s317 = sshll.u32 [#allocation3], 4
      %s318 = int_to_ptr.vmem [resolvable:$true] %s317
      %323 = dma.vmem_to_hbm [thread:$0]  %s318, 32, %s7, [#allocation4], 32, 32, 2
    $region33: #{c_cnn_forward.1} parent=1 // pred_fallthru
      _
    // Predicated region
    $region34: #{c_cnn_forward.1} parent=1 // pred_check
      _
    $region35: #{c_cnn_forward.1} parent=1 // pred_check_branch
      %325 = sbr.rel (0) target = $region37
    $region36: #{c_cnn_forward.1} parent=1 // pred_region
      %326 = dma.done [#allocation4], 128
    $region37: #{c_cnn_forward.1} parent=1 // pred_fallthru
      _
    %327 = vsyncpa [#allocation4], 1

</llo_original>
